<compile_context>
chip_gen: v7x
topology: tpu7x:2x2x1
jax: 0.10.0
libtpu: 0.0.40
codegen_flags: <defaults>
</compile_context>

<pallas_src>
import jax
import jax.numpy as jnp
from jax import lax
from jax.experimental import pallas as pl
from jax.experimental.pallas import tpu as pltpu

_EPS = 1e-12            # torch.nn.functional.normalize default eps
_EPS_SQ = _EPS * _EPS   # clamp ||x||^2 below by eps^2  (== clamping ||x|| below by eps)

_VMEM_LIMIT_BYTES = 32 * 1024 * 1024   # explicit scoped-VMEM budget (safe on v5e/v6e/v7x)
_TARGET_TILE_BYTES = 8 * 1024 * 1024   # per input buffer; x2 when double-buffered
_MAX_TILE_ROWS = 8192


def _masking_kernel_rowsum(x_ref, w_ref, o_ref):
    """General path: one logical row per sublane row.

    x_ref: (TM, D), w_ref: (1, D), o_ref: (TM, 1).
    """
    x = x_ref[...].astype(jnp.float32)
    w = w_ref[...].astype(jnp.float32)                 # (1, D), VPU broadcast
    dot = jnp.sum(x * w, axis=-1, keepdims=True)       # lane reduction (XLU)
    sq = jnp.sum(x * x, axis=-1, keepdims=True)
    inv = lax.rsqrt(jnp.maximum(sq, _EPS_SQ))          # EUP, per-row only
    o_ref[...] = jnp.clip(dot * inv, 0.0, 1.0).astype(o_ref.dtype)


def _masking_kernel_folded(x_ref, w_ref, sel_ref, o_ref):
    """Small-D path: k = 128 // D logical rows folded into the 128-lane axis.

    x_ref: (TM, k*D)   lanes [j*D:(j+1)*D] hold logical row (tile_row*k + j)
    w_ref: (1, k*D)    weight row tiled k times
    sel_ref: (k*D, k)  0/1 block-diagonal segment selector
    o_ref: (TM, k)
    """
    x = x_ref[...].astype(jnp.float32)
    w = w_ref[...].astype(jnp.float32)
    sel = sel_ref[...]
    # Segmented lane reductions via a tiny selector matmul (MXU slot is otherwise idle).
    dot = jnp.dot(x * w, sel, preferred_element_type=jnp.float32)   # (TM, k)
    sq = jnp.dot(x * x, sel, preferred_element_type=jnp.float32)    # (TM, k)
    inv = lax.rsqrt(jnp.maximum(sq, _EPS_SQ))
    o_ref[...] = jnp.clip(dot * inv, 0.0, 1.0).astype(o_ref.dtype)


def _choose_tile_rows(n_rows, row_bytes):
    """Largest row tile under the VMEM budget (multiple of 8, or the full extent)."""
    t = _TARGET_TILE_BYTES // max(row_bytes, 1)
    t = max(8, min(t, _MAX_TILE_ROWS))
    t = (t // 8) * 8
    if t >= n_rows:
        return max(n_rows, 1)   # single full-extent block (no 8-row alignment needed)
    return t


@jax.jit
def masking_forward(x, weight):
    """x: (..., emb_dim); weight: (1, emb_dim) as in nn.Linear(emb_dim, 1, bias=False)."""
    *lead, emb_dim = x.shape
    n = 1
    for d in lead:
        n *= d
    itemsize = jnp.dtype(x.dtype).itemsize

    # Fold factor: pack k rows per 128-lane vreg row when emb_dim divides 128.
    k = 128 // emb_dim if (emb_dim < 128 and 128 % emb_dim == 0) else 1
    if k > 1 and n % k != 0:
        k = 1   # avoid a padding copy of x for ragged row counts

    w_row = weight.reshape(1, emb_dim).astype(x.dtype)

    cost = pl.CostEstimate(
        flops=4 * n * emb_dim,
        transcendentals=n,
        bytes_accessed=n * emb_dim * itemsize + n * itemsize + emb_dim * itemsize,
    )
    cparams = pltpu.CompilerParams(
        dimension_semantics=("parallel",),       # row axis shards across v7x's 2 TCs
        vmem_limit_bytes=_VMEM_LIMIT_BYTES,
    )

    if k > 1:
        n_rows = n // k
        width = k * emb_dim                      # == 128 lanes, fully utilized
        x2 = x.reshape(n_rows, width)
        w_tiled = jnp.tile(w_row, (1, k))        # (1, k*D)
        sel = jnp.repeat(jnp.eye(k, dtype=jnp.float32), emb_dim, axis=0)  # (k*D, k)
        tm = _choose_tile_rows(n_rows, width * itemsize)
        out = pl.pallas_call(
            _masking_kernel_folded,
            out_shape=jax.ShapeDtypeStruct((n_rows, k), x.dtype),
            grid_spec=pltpu.PrefetchScalarGridSpec(
                num_scalar_prefetch=0,
                grid=(pl.cdiv(n_rows, tm),),
                in_specs=[
                    pl.BlockSpec((tm, width), lambda i: (i, 0)),
                    pl.BlockSpec((1, width), lambda i: (0, 0)),
                    pl.BlockSpec((width, k), lambda i: (0, 0)),
                ],
                out_specs=pl.BlockSpec((tm, k), lambda i: (i, 0)),
            ),
            compiler_params=cparams,
            cost_estimate=cost,
        )(x2, w_tiled, sel)
        return out.reshape(*lead, 1)

    # General path: one logical row per sublane row.
    x2 = x.reshape(n, emb_dim)
    tm = _choose_tile_rows(n, emb_dim * itemsize)
    out = pl.pallas_call(
        _masking_kernel_rowsum,
        out_shape=jax.ShapeDtypeStruct((n, 1), x.dtype),
        grid_spec=pltpu.PrefetchScalarGridSpec(
            num_scalar_prefetch=0,
            grid=(pl.cdiv(n, tm),),
            in_specs=[
                pl.BlockSpec((tm, emb_dim), lambda i: (i, 0)),
                pl.BlockSpec((1, emb_dim), lambda i: (0, 0)),
            ],
            out_specs=pl.BlockSpec((tm, 1), lambda i: (i, 0)),
        ),
        compiler_params=cparams,
        cost_estimate=cost,
    )(x2, w_row)
    return out.reshape(*lead, 1)


def _reference(x, weight):
    xf = x.astype(jnp.float32)
    norm = jnp.maximum(jnp.sqrt(jnp.sum(xf * xf, axis=-1, keepdims=True)), _EPS)
    y = (xf / norm) @ weight.astype(jnp.float32).T
    return jnp.clip(y, 0.0, 1.0).astype(x.dtype)


if __name__ == "__main__":
    key = jax.random.PRNGKey(0)
    keys = jax.random.split(key, 6)

    def run_case(lead_shape, emb_dim, kx, kw):
        x = jax.random.normal(kx, (*lead_shape, emb_dim), dtype=jnp.float32)
        bound = 1.0 / (emb_dim ** 0.5)
        weight = jax.random.uniform(
            kw, (1, emb_dim), minval=-bound, maxval=bound, dtype=jnp.float32)
        out = jax.block_until_ready(masking_forward(x, weight))
        ref = _reference(x, weight)
        assert out.shape == (*lead_shape, 1), out.shape
        err = float(jnp.max(jnp.abs(out - ref)))
        assert jnp.allclose(out, ref, atol=5e-5, rtol=5e-5), err

    # Primary case (module-typical small shape): emb_dim=32 -> folded (k=4) path.
    run_case((2, 8), 32, keys[0], keys[1])
    # emb_dim that does not divide 128 -> general row-sum path.
    run_case((3, 5), 48, keys[2], keys[3])
    # emb_dim=32 with ragged row count (14 % 4 != 0) -> general-path fallback.
    run_case((2, 7), 32, keys[4], keys[5])

    print("KERNEL_OK")
</pallas_src>

<mosaic_0001>
module attributes {stable_mosaic.version = 11 : i64} {
  func.func @_masking_kernel_folded(%arg0: i32, %arg1: memref<4x128xf32, #tpu.memory_space<vmem>>, %arg2: memref<1x128xf32, #tpu.memory_space<vmem>>, %arg3: memref<128x4xf32, #tpu.memory_space<vmem>>, %arg4: memref<4x4xf32, #tpu.memory_space<vmem>>) attributes {dimension_semantics = [#tpu.dimension_semantics<parallel>], iteration_bounds = array<i64: 1>, scalar_prefetch = 0 : i64, scratch_operands = 0 : i64, tpu.core_type = #tpu.core_type<tc>, window_params = [{transform_indices = @transform_0, window_bounds = array<i64: 4, 128>}, {pipeline_mode = #tpu.pipeline_mode<synchronous>, transform_indices = @transform_1, window_bounds = array<i64: 1, 128>}, {pipeline_mode = #tpu.pipeline_mode<synchronous>, transform_indices = @transform_2, window_bounds = array<i64: 128, 4>}, {transform_indices = @transform_3, window_bounds = array<i64: 4, 4>}]} {
    %c0 = arith.constant 0 : index
    %c0_0 = arith.constant 0 : index
    %0 = vector.load %arg1[%c0, %c0_0] : memref<4x128xf32, #tpu.memory_space<vmem>>, vector<4x128xf32>
    %c0_1 = arith.constant 0 : index
    %c0_2 = arith.constant 0 : index
    %1 = vector.load %arg2[%c0_1, %c0_2] : memref<1x128xf32, #tpu.memory_space<vmem>>, vector<1x128xf32>
    %c0_3 = arith.constant 0 : index
    %c0_4 = arith.constant 0 : index
    %2 = vector.load %arg3[%c0_3, %c0_4] : memref<128x4xf32, #tpu.memory_space<vmem>>, vector<128x4xf32>
    %3 = vector.broadcast %1 : vector<1x128xf32> to vector<4x128xf32>
    %4 = arith.mulf %0, %3 : vector<4x128xf32>
    %cst = arith.constant dense<0.000000e+00> : vector<4x4xf32>
    %5 = tpu.matmul %4, %2, %cst {dimension_numbers = #tpu.dot_dimension_numbers<[1], [0], [0], [1], [0, 0, 1, 1], [], []>} : vector<4x128xf32>, vector<128x4xf32>, vector<4x4xf32> -> vector<4x4xf32>
    %6 = arith.mulf %0, %0 : vector<4x128xf32>
    %cst_5 = arith.constant dense<0.000000e+00> : vector<4x4xf32>
    %7 = tpu.matmul %6, %2, %cst_5 {dimension_numbers = #tpu.dot_dimension_numbers<[1], [0], [0], [1], [0, 0, 1, 1], [], []>} : vector<4x128xf32>, vector<128x4xf32>, vector<4x4xf32> -> vector<4x4xf32>
    %cst_6 = arith.constant 1.000000e-24 : f32
    %8 = vector.broadcast %cst_6 : f32 to vector<4x4xf32>
    %9 = arith.maximumf %7, %8 : vector<4x4xf32>
    %10 = math.rsqrt %9 : vector<4x4xf32>
    %11 = arith.mulf %5, %10 : vector<4x4xf32>
    %cst_7 = arith.constant 0.000000e+00 : f32
    %cst_8 = arith.constant 1.000000e+00 : f32
    %12 = vector.broadcast %cst_7 : f32 to vector<4x4xf32>
    %13 = arith.maximumf %12, %11 : vector<4x4xf32>
    %14 = vector.broadcast %cst_8 : f32 to vector<4x4xf32>
    %15 = arith.minimumf %14, %13 : vector<4x4xf32>
    %c0_9 = arith.constant 0 : index
    %c0_10 = arith.constant 0 : index
    %16 = vector.load %arg4[%c0_9, %c0_10] : memref<4x4xf32, #tpu.memory_space<vmem>>, vector<4x4xf32>
    tpu.vector_store %arg4[%c0_9, %c0_10], %15 {strides = array<i32>} : memref<4x4xf32, #tpu.memory_space<vmem>>, vector<4x4xf32>,
    return
  }
  func.func @transform_0(%arg0: i32) -> (i32, i32) {
    %c0_i32 = arith.constant 0 : i32
    %c0_i32_0 = arith.constant 0 : i32
    return %arg0, %c0_i32 : i32, i32
  }
  func.func @transform_1(%arg0: i32) -> (i32, i32) {
    %c0_i32 = arith.constant 0 : i32
    %c0_i32_0 = arith.constant 0 : i32
    %c0_i32_1 = arith.constant 0 : i32
    return %c0_i32, %c0_i32_0 : i32, i32
  }
  func.func @transform_2(%arg0: i32) -> (i32, i32) {
    %c0_i32 = arith.constant 0 : i32
    %c0_i32_0 = arith.constant 0 : i32
    %c0_i32_1 = arith.constant 0 : i32
    return %c0_i32, %c0_i32_0 : i32, i32
  }
  func.func @transform_3(%arg0: i32) -> (i32, i32) {
    %c0_i32 = arith.constant 0 : i32
    %c0_i32_0 = arith.constant 0 : i32
    return %arg0, %c0_i32 : i32, i32
  }
}

</mosaic_0001>

<llo_original>
// kernel: masking_forward.1
$region0: #{masking_forward.1}
  #allocation0 [shape = 'u32[]', space=smem, size = 0x4, offset = 0x4, fixed_abs, tag = 'smem constant byte address 0x4 - core index']
  #allocation1 [shape = 'u32[144,128]{1,0:T(1,128)}', space=vmem, size = 0x12000, scoped, tag = 'internal scratch']
  %s0 = inlined_call_operand.vmem [shape: f32[4,128], index: 0, kind: input, shape index: {}]
  %s1 = inlined_call_operand.vmem [shape: f32[1,128], index: 1, kind: input, shape index: {}]
  %s2 = inlined_call_operand.vmem [shape: f32[128,4], index: 2, kind: input, shape index: {}]
  %s3 = inlined_call_operand.vmem [shape: f32[4,4], index: 3, kind: output, shape index: {}]
  %s4 = sld [smem:[#allocation0]]
  $region22: #{masking_forward.1} parent=0
    _
  %s6 = ssub.s32 1, %s4
  %s7 = scalar_select 0, %s6, %s4
  // Predicated region
  $region2: #{masking_forward.1} parent=0 // pred_check
    _
  $region3: #{masking_forward.1} parent=0 // pred_check_branch
    %9 = sbr.rel (0) target = $region5
  $region4: #{masking_forward.1} parent=0 // pred_region
    _
  $region5: #{masking_forward.1} parent=0 // pred_fallthru
    _
  // Predicated region
  $region6: #{masking_forward.1} parent=0 // pred_check
    _
  $region7: #{masking_forward.1} parent=0 // pred_check_branch
    %11 = sbr.rel (0) target = $region9
  $region8: #{masking_forward.1} parent=0 // pred_region
    _
  $region9: #{masking_forward.1} parent=0 // pred_fallthru
    _
  // Predicated region
  $region10: #{masking_forward.1} parent=0 // pred_check
    _
  $region11: #{masking_forward.1} parent=0 // pred_check_branch
    %13 = sbr.rel (0) target = $region13
  $region12: #{masking_forward.1} parent=0 // pred_region
    _
  $region13: #{masking_forward.1} parent=0 // pred_fallthru
    _
  %v14 = vld [vmem:[%s0] sm:$0xf]
  %v15 = vld [vmem:[%s1] sm:$0x1]
  %v16 = vld [vmem:[%s2] sm:$0xff]
  %v17 = vld [vmem:[%s2 + $0x8] sm:$0xff]
  %v18 = vld [vmem:[%s2 + $0x10] sm:$0xff]
  %v19 = vld [vmem:[%s2 + $0x18] sm:$0xff]
  %v20 = vld [vmem:[%s2 + $0x20] sm:$0xff]
  %v21 = vld [vmem:[%s2 + $0x28] sm:$0xff]
  %v22 = vld [vmem:[%s2 + $0x30] sm:$0xff]
  %v23 = vld [vmem:[%s2 + $0x38] sm:$0xff]
  %v24 = vld [vmem:[%s2 + $0x40] sm:$0xff]
  %v25 = vld [vmem:[%s2 + $0x48] sm:$0xff]
  %v26 = vld [vmem:[%s2 + $0x50] sm:$0xff]
  %v27 = vld [vmem:[%s2 + $0x58] sm:$0xff]
  %v28 = vld [vmem:[%s2 + $0x60] sm:$0xff]
  %v29 = vld [vmem:[%s2 + $0x68] sm:$0xff]
  %v30 = vld [vmem:[%s2 + $0x70] sm:$0xff]
  %v31 = vld [vmem:[%s2 + $0x78] sm:$0xff]
  %v33 = vlaneseq
  %v34 = vshrl.u32 %v33, 7
  %v35 = vsub.s32 0, %v34
  %v36 = vrot.slane %v15, %v35
  %v38 = vmul.f32 %v14, %v36
  %39 = vmatprep.subr.mxu0 0.0
  %40 = vmatpush1.msra.mxu0 %v16
  %41 = vmatprep.subr.mxu0 0.0
  %42 = vmatpush1.msra.mxu0 %v17
  %43 = vmatprep.subr.mxu0 0.0
  %44 = vmatpush1.msra.mxu0 %v18
  %45 = vmatprep.subr.mxu0 0.0
  %46 = vmatpush1.msra.mxu0 %v19
  %47 = vmatprep.subr.mxu0 0.0
  %48 = vmatpush1.msra.mxu0 %v20
  %49 = vmatprep.subr.mxu0 0.0
  %50 = vmatpush1.msra.mxu0 %v21
  %51 = vmatprep.subr.mxu0 0.0
  %52 = vmatpush1.msra.mxu0 %v22
  %53 = vmatprep.subr.mxu0 0.0
  %54 = vmatpush1.msra.mxu0 %v23
  %55 = vmatprep.subr.mxu0 0.0
  %56 = vmatpush1.msra.mxu0 %v24
  %57 = vmatprep.subr.mxu0 0.0
  %58 = vmatpush1.msra.mxu0 %v25
  %59 = vmatprep.subr.mxu0 0.0
  %60 = vmatpush1.msra.mxu0 %v26
  %61 = vmatprep.subr.mxu0 0.0
  %62 = vmatpush1.msra.mxu0 %v27
  %63 = vmatprep.subr.mxu0 0.0
  %64 = vmatpush1.msra.mxu0 %v28
  %65 = vmatprep.subr.mxu0 0.0
  %66 = vmatpush1.msra.mxu0 %v29
  %67 = vmatprep.subr.mxu0 0.0
  %68 = vmatpush1.msra.mxu0 %v30
  %69 = vmatprep.subr.mxu0 0.0
  %70 = vmatpush1.msra.mxu0 %v31
  %71 = vmatprep.subr.mxu0 0.0
  %72 = vmatpush1.msra.mxu0 0.0
  %73 = vmatprep.subr.mxu0 0.0
  %74 = vmatpush1.msra.mxu0 0.0
  %75 = vmatprep.subr.mxu0 0.0
  %76 = vmatpush1.msra.mxu0 0.0
  %77 = vmatprep.subr.mxu0 0.0
  %78 = vmatpush1.msra.mxu0 0.0
  %79 = vmatprep.subr.mxu0 0.0
  %80 = vmatpush1.msra.mxu0 0.0
  %81 = vmatprep.subr.mxu0 0.0
  %82 = vmatpush1.msra.mxu0 0.0
  %83 = vmatprep.subr.mxu0 0.0
  %84 = vmatpush1.msra.mxu0 0.0
  %85 = vmatprep.subr.mxu0 0.0
  %86 = vmatpush1.msra.mxu0 0.0
  %87 = vmatprep.subr.mxu0 0.0
  %88 = vmatpush1.msra.mxu0 0.0
  %89 = vmatprep.subr.mxu0 0.0
  %90 = vmatpush1.msra.mxu0 0.0
  %91 = vmatprep.subr.mxu0 0.0
  %92 = vmatpush1.msra.mxu0 0.0
  %93 = vmatprep.subr.mxu0 0.0
  %94 = vmatpush1.msra.mxu0 0.0
  %95 = vmatprep.subr.mxu0 0.0
  %96 = vmatpush1.msra.mxu0 0.0
  %97 = vmatprep.subr.mxu0 0.0
  %98 = vmatpush1.msra.mxu0 0.0
  %99 = vmatprep.subr.mxu0 0.0
  %100 = vmatpush1.msra.mxu0 0.0
  %101 = vmatprep.subr.mxu0 0.0
  %102 = vmatpush1.msra.mxu0 0.0
  %103 = vmatprep.mubr.f32.mxu0 0.0
  %104 = vmatmul.mubr.f32.gmra.mrb[0].mxu0 %v38
  %v105 = vpop.f32.mrb[0].mxu0
  %v106 = vadd.f32 0.0, %v105
  %v107 = vpop.f32.mrb[0].mxu0
  %108 = vdwg.mxu0
  %v109 = vmul.f32 %v14, %v14
  %110 = vmatprep.subr.mxu0 0.0
  %111 = vmatpush1.msra.mxu0 %v16
  %112 = vmatprep.subr.mxu0 0.0
  %113 = vmatpush1.msra.mxu0 %v17
  %114 = vmatprep.subr.mxu0 0.0
  %115 = vmatpush1.msra.mxu0 %v18
  %116 = vmatprep.subr.mxu0 0.0
  %117 = vmatpush1.msra.mxu0 %v19
  %118 = vmatprep.subr.mxu0 0.0
  %119 = vmatpush1.msra.mxu0 %v20
  %120 = vmatprep.subr.mxu0 0.0
  %121 = vmatpush1.msra.mxu0 %v21
  %122 = vmatprep.subr.mxu0 0.0
  %123 = vmatpush1.msra.mxu0 %v22
  %124 = vmatprep.subr.mxu0 0.0
  %125 = vmatpush1.msra.mxu0 %v23
  %126 = vmatprep.subr.mxu0 0.0
  %127 = vmatpush1.msra.mxu0 %v24
  %128 = vmatprep.subr.mxu0 0.0
  %129 = vmatpush1.msra.mxu0 %v25
  %130 = vmatprep.subr.mxu0 0.0
  %131 = vmatpush1.msra.mxu0 %v26
  %132 = vmatprep.subr.mxu0 0.0
  %133 = vmatpush1.msra.mxu0 %v27
  %134 = vmatprep.subr.mxu0 0.0
  %135 = vmatpush1.msra.mxu0 %v28
  %136 = vmatprep.subr.mxu0 0.0
  %137 = vmatpush1.msra.mxu0 %v29
  %138 = vmatprep.subr.mxu0 0.0
  %139 = vmatpush1.msra.mxu0 %v30
  %140 = vmatprep.subr.mxu0 0.0
  %141 = vmatpush1.msra.mxu0 %v31
  %142 = vmatprep.subr.mxu0 0.0
  %143 = vmatpush1.msra.mxu0 0.0
  %144 = vmatprep.subr.mxu0 0.0
  %145 = vmatpush1.msra.mxu0 0.0
  %146 = vmatprep.subr.mxu0 0.0
  %147 = vmatpush1.msra.mxu0 0.0
  %148 = vmatprep.subr.mxu0 0.0
  %149 = vmatpush1.msra.mxu0 0.0
  %150 = vmatprep.subr.mxu0 0.0
  %151 = vmatpush1.msra.mxu0 0.0
  %152 = vmatprep.subr.mxu0 0.0
  %153 = vmatpush1.msra.mxu0 0.0
  %154 = vmatprep.subr.mxu0 0.0
  %155 = vmatpush1.msra.mxu0 0.0
  %156 = vmatprep.subr.mxu0 0.0
  %157 = vmatpush1.msra.mxu0 0.0
  %158 = vmatprep.subr.mxu0 0.0
  %159 = vmatpush1.msra.mxu0 0.0
  %160 = vmatprep.subr.mxu0 0.0
  %161 = vmatpush1.msra.mxu0 0.0
  %162 = vmatprep.subr.mxu0 0.0
  %163 = vmatpush1.msra.mxu0 0.0
  %164 = vmatprep.subr.mxu0 0.0
  %165 = vmatpush1.msra.mxu0 0.0
  %166 = vmatprep.subr.mxu0 0.0
  %167 = vmatpush1.msra.mxu0 0.0
  %168 = vmatprep.subr.mxu0 0.0
  %169 = vmatpush1.msra.mxu0 0.0
  %170 = vmatprep.subr.mxu0 0.0
  %171 = vmatpush1.msra.mxu0 0.0
  %172 = vmatprep.subr.mxu0 0.0
  %173 = vmatpush1.msra.mxu0 0.0
  %174 = vmatprep.mubr.f32.mxu0 0.0
  %175 = vmatmul.mubr.f32.gmra.mrb[0].mxu0 %v109
  %v176 = vpop.f32.mrb[0].mxu0
  %v177 = vadd.f32 0.0, %v176
  %v178 = vpop.f32.mrb[0].mxu0
  %179 = vdwg.mxu0
  %v180 = vmax.f32 %v177, 1e-24
  %v181 = vrsqrt.pop %v180
  %v182 = vmul.f32 %v106, %v181
  %v183 = vmax.f32 %v182, 0.0
  %v184 = vmin.f32 %v183, 1.0
  %vm185 = vcmask 27648
  %186 = vst.msk [vmem:[%s3] sm:$0xf] %vm185, %v184
  // Predicated region
  $region14: #{masking_forward.1} parent=0 // pred_check
    _
  $region15: #{masking_forward.1} parent=0 // pred_check_branch
    %188 = sbr.rel (0) target = $region17
  $region16: #{masking_forward.1} parent=0 // pred_region
    _
  $region17: #{masking_forward.1} parent=0 // pred_fallthru
    _
  // Predicated region
  $region18: #{masking_forward.1} parent=0 // pred_check
    _
  $region19: #{masking_forward.1} parent=0 // pred_check_branch
    %190 = sbr.rel (0) target = $region21
  $region20: #{masking_forward.1} parent=0 // pred_region
    _
  $region21: #{masking_forward.1} parent=0 // pred_fallthru
    _

</llo_original>
